<compile_context>
chip_gen: v7x
topology: tpu7x:2x2x1
jax: 0.10.0
libtpu: 0.0.40
codegen_flags: <defaults>
</compile_context>

<pallas_src>
from functools import partial

import jax
import jax.numpy as jnp
from jax import lax
from jax.experimental import pallas as pl
from jax.experimental.pallas import tpu as pltpu


def eeu_kernel(x_ref, w_ref, b_ref, a_ref, edge_ref, out_ref, *, C, W, HW, nb):
    # x_ref block: (nb*C, H*W); row = (image, channel) plane, lane l = h*W + w.
    x = x_ref[...].astype(jnp.float32)

    # --- 3x3 avg pool, stride 1, zero pad 1, /9 (count_include_pad=True) ---
    # W-neighbours live at lane +-1, H-neighbours at lane +-W; circular rolls
    # (XLU) plus iota border masks reproduce the zero padding exactly.
    lane = lax.broadcasted_iota(jnp.int32, (1, HW), 1)
    col = lane % W
    wm1 = jnp.where(col != 0,     pltpu.roll(x, 1,      axis=1), 0.0)  # value at w-1
    wp1 = jnp.where(col != W - 1, pltpu.roll(x, HW - 1, axis=1), 0.0)  # value at w+1
    sw = x + wm1 + wp1
    hm1 = jnp.where(lane >= W,     pltpu.roll(sw, W,      axis=1), 0.0)  # value at h-1
    hp1 = jnp.where(lane < HW - W, pltpu.roll(sw, HW - W, axis=1), 0.0)  # value at h+1
    edge = x - (sw + hm1 + hp1) * (1.0 / 9.0)

    # --- per-channel PReLU on edge (alpha pre-tiled to (nb*C, 1) host-side) ---
    alpha = a_ref[...].astype(jnp.float32)
    edge_ref[...] = jnp.where(edge >= 0.0, edge, alpha * edge).astype(edge_ref.dtype)

    # --- 1x1 conv with folded BN -> sigmoid gate -> residual, per image ---
    # (Small static unroll over the images folded into this block; at large C
    #  the weight / edge operand could be cast to bf16 for the MXU.)
    w = w_ref[...].astype(jnp.float32)           # (C_out, C_in)
    b = b_ref[...].astype(jnp.float32)           # (C, 1)
    for n in range(nb):
        r0, r1 = n * C, (n + 1) * C
        y = jnp.dot(w, edge[r0:r1, :], preferred_element_type=jnp.float32) + b
        gate = jax.nn.sigmoid(y)
        x_n = x[r0:r1, :]
        out_ref[r0:r1, :] = (gate * x_n + x_n).astype(out_ref.dtype)


def _choose_batch_fold(N, C, HW, itemsize, target_bytes=512 * 1024, max_unroll=8):
    """How many images to fold into one grid block.

    Targets ~target_bytes per input block (amortizes per-grid-step overhead on
    single-TC v5e/v6e) while keeping >=4 grid steps when N allows, so each v7x
    TensorCore still gets >=2 pipelined steps; the resulting row count nb*C is
    kept sublane-aligned (multiple of 8) for a legal, dense BlockSpec.
    """
    per_image = C * HW * itemsize
    want = max(1, min(N, max_unroll, target_bytes // max(per_image, 1)))
    if N >= 4:
        want = max(1, min(want, N // 4))
    for nb in range(int(want), 0, -1):
        if N % nb == 0 and (nb * C) % 8 == 0:
            return nb
    # Rare fallback (e.g. C not sublane-friendly at small N): one full-size
    # block — block rows equal to the full array dim is always legal.
    return N


def eeu_pallas(x_nchw, conv_w, conv_b, gamma, beta, rmean, rvar, alpha,
               eps=1e-5, io_dtype=None):
    """EEU forward pass; input and outputs are NCHW, matching the PyTorch module."""
    N, C, H, W = x_nchw.shape
    HW = H * W
    io_dtype = jnp.dtype(io_dtype) if io_dtype is not None else x_nchw.dtype

    # NCHW -> (N*C, H*W): a free bitcast (no HBM relayout), fully lane-dense.
    x2 = x_nchw.reshape(N * C, HW).astype(io_dtype)

    # Fold BatchNorm (inference mode) into the 1x1 conv.
    scale = gamma / jnp.sqrt(rvar + eps)
    w_f = (conv_w * scale[:, None]).astype(jnp.float32)                 # (C_out, C_in)
    b_f = ((conv_b - rmean) * scale + beta).reshape(C, 1).astype(jnp.float32)

    nb = _choose_batch_fold(N, C, HW, io_dtype.itemsize)
    R = nb * C
    a_t = jnp.tile(alpha, nb).reshape(R, 1).astype(jnp.float32)         # per-row PReLU slope

    elems = N * C * HW
    cost = pl.CostEstimate(
        flops=int(elems * (12 + 2 * C)),
        transcendentals=int(elems),
        bytes_accessed=int(3 * elems * io_dtype.itemsize + (C * C + (nb + 2) * C) * 4),
    )

    # TODO(synk): for very large H*W tile the spatial axis with a one-row halo
    # and re-derive the block plan / vmem_limit_bytes against v7x's 64 MiB VMEM;
    # at the ~0.5 MiB blocks chosen here this is unnecessary on all generations.
    edge2, out2 = pl.pallas_call(
        partial(eeu_kernel, C=C, W=W, HW=HW, nb=nb),
        out_shape=(
            jax.ShapeDtypeStruct((N * C, HW), io_dtype),
            jax.ShapeDtypeStruct((N * C, HW), io_dtype),
        ),
        grid=(N // nb,),
        in_specs=[
            pl.BlockSpec((R, HW), lambda i: (i, 0)),
            pl.BlockSpec((C, C), lambda i: (0, 0)),
            pl.BlockSpec((C, 1), lambda i: (0, 0)),
            pl.BlockSpec((R, 1), lambda i: (0, 0)),
        ],
        out_specs=(
            pl.BlockSpec((R, HW), lambda i: (i, 0)),
            pl.BlockSpec((R, HW), lambda i: (i, 0)),
        ),
        compiler_params=pltpu.CompilerParams(dimension_semantics=("parallel",)),
        cost_estimate=cost,
    )(x2, w_f, b_f, a_t)

    # (N*C, H*W) -> NCHW: free reshapes, no transpose.
    return edge2.reshape(N, C, H, W), out2.reshape(N, C, H, W)


def eeu_reference(x_nchw, conv_w, conv_b, gamma, beta, rmean, rvar, alpha, eps=1e-5):
    pooled = lax.reduce_window(
        x_nchw, 0.0, lax.add,
        window_dimensions=(1, 1, 3, 3),
        window_strides=(1, 1, 1, 1),
        padding=((0, 0), (0, 0), (1, 1), (1, 1)),
    ) / 9.0
    edge = x_nchw - pooled
    conv = jnp.einsum('nchw,oc->nohw', edge, conv_w) + conv_b[None, :, None, None]
    bn = ((conv - rmean[None, :, None, None])
          / jnp.sqrt(rvar[None, :, None, None] + eps)
          * gamma[None, :, None, None] + beta[None, :, None, None])
    weight = jax.nn.sigmoid(bn)
    out = weight * x_nchw + x_nchw
    edge_prelu = jnp.where(edge >= 0, edge, alpha[None, :, None, None] * edge)
    return edge_prelu, out


if __name__ == "__main__":
    key = jax.random.PRNGKey(0)
    N, C, H, W = 2, 8, 16, 16          # H*W = 256 -> fully lane-dense blocks

    k_x, k_w, k_b, k_g, k_be, k_m, k_v = jax.random.split(key, 7)

    # input in PyTorch NCHW convention
    x_nchw = jax.random.normal(k_x, (N, C, H, W), dtype=jnp.float32)

    # deterministic parameter init (shapes per EEU.__init__)
    conv_w = jax.random.normal(k_w, (C, C), dtype=jnp.float32) * 0.1     # Conv2d(C,C,1) weight[:, :, 0, 0]
    conv_b = jax.random.normal(k_b, (C,), dtype=jnp.float32) * 0.1       # Conv2d bias
    gamma = 1.0 + 0.1 * jax.random.normal(k_g, (C,), dtype=jnp.float32)  # BN weight
    beta = 0.1 * jax.random.normal(k_be, (C,), dtype=jnp.float32)        # BN bias
    rmean = 0.1 * jax.random.normal(k_m, (C,), dtype=jnp.float32)        # BN running_mean
    rvar = jnp.abs(jax.random.normal(k_v, (C,), dtype=jnp.float32)) + 0.5  # BN running_var
    alpha = jnp.full((C,), 0.25, dtype=jnp.float32)                      # PReLU per-channel (default 0.25)
    eps = 1e-5

    edge_prelu, out = eeu_pallas(x_nchw, conv_w, conv_b, gamma, beta, rmean, rvar, alpha, eps)
    jax.block_until_ready((edge_prelu, out))

    # correctness check against a pure-JAX reference (NCHW, like the module)
    edge_ref, out_ref = eeu_reference(x_nchw, conv_w, conv_b, gamma, beta, rmean, rvar, alpha, eps)
    assert jnp.allclose(edge_prelu, edge_ref, atol=1e-5, rtol=1e-5)
    assert jnp.allclose(out, out_ref, atol=1e-5, rtol=1e-5)

    print("KERNEL_OK")
</pallas_src>

<mosaic_0001>
module attributes {stable_mosaic.version = 11 : i64} {
  func.func @eeu_kernel(%arg0: i32, %arg1: memref<16x256xf32, #tpu.memory_space<vmem>>, %arg2: memref<8x8xf32, #tpu.memory_space<vmem>>, %arg3: memref<8x1xf32, #tpu.memory_space<vmem>>, %arg4: memref<16x1xf32, #tpu.memory_space<vmem>>, %arg5: memref<16x256xf32, #tpu.memory_space<vmem>>, %arg6: memref<16x256xf32, #tpu.memory_space<vmem>>) attributes {dimension_semantics = [#tpu.dimension_semantics<parallel>], iteration_bounds = array<i64: 1>, scalar_prefetch = 0 : i64, scratch_operands = 0 : i64, tpu.core_type = #tpu.core_type<tc>, window_params = [{transform_indices = @transform_0, window_bounds = array<i64: 16, 256>}, {pipeline_mode = #tpu.pipeline_mode<synchronous>, transform_indices = @transform_1, window_bounds = array<i64: 8, 8>}, {pipeline_mode = #tpu.pipeline_mode<synchronous>, transform_indices = @transform_2, window_bounds = array<i64: 8, 1>}, {pipeline_mode = #tpu.pipeline_mode<synchronous>, transform_indices = @transform_3, window_bounds = array<i64: 16, 1>}, {transform_indices = @transform_4, window_bounds = array<i64: 16, 256>}, {transform_indices = @transform_5, window_bounds = array<i64: 16, 256>}]} {
    %c0 = arith.constant 0 : index
    %c0_0 = arith.constant 0 : index
    %0 = vector.load %arg1[%c0, %c0_0] : memref<16x256xf32, #tpu.memory_space<vmem>>, vector<16x256xf32>
    %1 = tpu.iota {dimensions = array<i32: 1>} : vector<1x256xi32>
    %c16_i32 = arith.constant 16 : i32
    %c0_i32 = arith.constant 0 : i32
    %2 = arith.cmpi eq, %c16_i32, %c0_i32 : i32
    %c1_i32 = arith.constant 1 : i32
    %3 = arith.select %2, %c1_i32, %c16_i32 : i32
    %4 = vector.broadcast %3 : i32 to vector<1x256xi32>
    %5 = arith.remsi %1, %4 : vector<1x256xi32>
    %c0_i32_1 = arith.constant 0 : i32
    %6 = vector.broadcast %c0_i32_1 : i32 to vector<1x256xi32>
    %7 = arith.cmpi ne, %5, %6 : vector<1x256xi32>
    %c0_i32_2 = arith.constant 0 : i32
    %8 = vector.broadcast %c0_i32_2 : i32 to vector<1x256xi32>
    %9 = arith.cmpi slt, %5, %8 : vector<1x256xi32>
    %c0_i32_3 = arith.constant 0 : i32
    %10 = arith.cmpi slt, %3, %c0_i32_3 : i32
    %11 = vector.broadcast %10 : i1 to vector<1x256xi1>
    %12 = vector.broadcast %11 : vector<1x256xi1> to vector<1x256xi1>
    %13 = arith.xori %9, %12 : vector<1x256xi1>
    %14 = arith.andi %13, %7 : vector<1x256xi1>
    %15 = vector.broadcast %3 : i32 to vector<1x256xi32>
    %16 = arith.addi %5, %15 : vector<1x256xi32>
    %17 = arith.select %14, %16, %5 : vector<1x256xi1>, vector<1x256xi32>
    %c0_i32_4 = arith.constant 0 : i32
    %18 = vector.broadcast %c0_i32_4 : i32 to vector<1x256xi32>
    %19 = arith.cmpi ne, %17, %18 : vector<1x256xi32>
    %c1_i32_5 = arith.constant 1 : i32
    %20 = tpu.dynamic_rotate %0 by %c1_i32_5 dim 1 : vector<16x256xf32>, i32 -> vector<16x256xf32>
    %cst = arith.constant 0.000000e+00 : f32
    %21 = vector.shape_cast %19 : vector<1x256xi1> to vector<1x256xi1>
    %22 = vector.broadcast %21 : vector<1x256xi1> to vector<16x256xi1>
    %23 = vector.broadcast %cst : f32 to vector<16x256xf32>
    %24 = arith.select %22, %20, %23 : vector<16x256xi1>, vector<16x256xf32>
    %c15_i32 = arith.constant 15 : i32
    %25 = vector.broadcast %c15_i32 : i32 to vector<1x256xi32>
    %26 = arith.cmpi ne, %17, %25 : vector<1x256xi32>
    %c255_i32 = arith.constant 255 : i32
    %27 = tpu.dynamic_rotate %0 by %c255_i32 dim 1 : vector<16x256xf32>, i32 -> vector<16x256xf32>
    %cst_6 = arith.constant 0.000000e+00 : f32
    %28 = vector.shape_cast %26 : vector<1x256xi1> to vector<1x256xi1>
    %29 = vector.broadcast %28 : vector<1x256xi1> to vector<16x256xi1>
    %30 = vector.broadcast %cst_6 : f32 to vector<16x256xf32>
    %31 = arith.select %29, %27, %30 : vector<16x256xi1>, vector<16x256xf32>
    %32 = arith.addf %0, %24 : vector<16x256xf32>
    %33 = arith.addf %32, %31 : vector<16x256xf32>
    %c16_i32_7 = arith.constant 16 : i32
    %34 = vector.broadcast %c16_i32_7 : i32 to vector<1x256xi32>
    %35 = arith.cmpi sge, %1, %34 : vector<1x256xi32>
    %c16_i32_8 = arith.constant 16 : i32
    %36 = tpu.dynamic_rotate %33 by %c16_i32_8 dim 1 : vector<16x256xf32>, i32 -> vector<16x256xf32>
    %cst_9 = arith.constant 0.000000e+00 : f32
    %37 = vector.shape_cast %35 : vector<1x256xi1> to vector<1x256xi1>
    %38 = vector.broadcast %37 : vector<1x256xi1> to vector<16x256xi1>
    %39 = vector.broadcast %cst_9 : f32 to vector<16x256xf32>
    %40 = arith.select %38, %36, %39 : vector<16x256xi1>, vector<16x256xf32>
    %c240_i32 = arith.constant 240 : i32
    %41 = vector.broadcast %c240_i32 : i32 to vector<1x256xi32>
    %42 = arith.cmpi slt, %1, %41 : vector<1x256xi32>
    %c240_i32_10 = arith.constant 240 : i32
    %43 = tpu.dynamic_rotate %33 by %c240_i32_10 dim 1 : vector<16x256xf32>, i32 -> vector<16x256xf32>
    %cst_11 = arith.constant 0.000000e+00 : f32
    %44 = vector.shape_cast %42 : vector<1x256xi1> to vector<1x256xi1>
    %45 = vector.broadcast %44 : vector<1x256xi1> to vector<16x256xi1>
    %46 = vector.broadcast %cst_11 : f32 to vector<16x256xf32>
    %47 = arith.select %45, %43, %46 : vector<16x256xi1>, vector<16x256xf32>
    %48 = arith.addf %33, %40 : vector<16x256xf32>
    %49 = arith.addf %48, %47 : vector<16x256xf32>
    %cst_12 = arith.constant 0.111111112 : f32
    %50 = vector.broadcast %cst_12 : f32 to vector<16x256xf32>
    %51 = arith.mulf %49, %50 : vector<16x256xf32>
    %52 = arith.subf %0, %51 : vector<16x256xf32>
    %c0_13 = arith.constant 0 : index
    %c0_14 = arith.constant 0 : index
    %53 = vector.load %arg4[%c0_13, %c0_14] : memref<16x1xf32, #tpu.memory_space<vmem>>, vector<16x1xf32>
    %cst_15 = arith.constant 0.000000e+00 : f32
    %54 = vector.broadcast %cst_15 : f32 to vector<16x256xf32>
    %55 = arith.cmpf oge, %52, %54 : vector<16x256xf32>
    %56 = vector.broadcast %53 : vector<16x1xf32> to vector<16x256xf32>
    %57 = arith.mulf %56, %52 : vector<16x256xf32>
    %58 = arith.select %55, %52, %57 : vector<16x256xi1>, vector<16x256xf32>
    %c0_16 = arith.constant 0 : index
    %c0_17 = arith.constant 0 : index
    %59 = vector.load %arg5[%c0_16, %c0_17] : memref<16x256xf32, #tpu.memory_space<vmem>>, vector<16x256xf32>
    tpu.vector_store %arg5[%c0_16, %c0_17], %58 {strides = array<i32>} : memref<16x256xf32, #tpu.memory_space<vmem>>, vector<16x256xf32>,
    %c0_18 = arith.constant 0 : index
    %c0_19 = arith.constant 0 : index
    %60 = vector.load %arg2[%c0_18, %c0_19] : memref<8x8xf32, #tpu.memory_space<vmem>>, vector<8x8xf32>
    %c0_20 = arith.constant 0 : index
    %c0_21 = arith.constant 0 : index
    %61 = vector.load %arg3[%c0_20, %c0_21] : memref<8x1xf32, #tpu.memory_space<vmem>>, vector<8x1xf32>
    %62 = vector.extract_strided_slice %52 {offsets = [0, 0], sizes = [8, 256], strides = [1, 1]} : vector<16x256xf32> to vector<8x256xf32>
    %cst_22 = arith.constant dense<0.000000e+00> : vector<8x256xf32>
    %63 = tpu.matmul %60, %62, %cst_22 {dimension_numbers = #tpu.dot_dimension_numbers<[1], [0], [0], [1], [0, 0, 1, 1], [], []>} : vector<8x8xf32>, vector<8x256xf32>, vector<8x256xf32> -> vector<8x256xf32>
    %64 = vector.broadcast %61 : vector<8x1xf32> to vector<8x256xf32>
    %65 = arith.addf %63, %64 : vector<8x256xf32>
    %66 = arith.negf %65 : vector<8x256xf32>
    %67 = math.exp %66 : vector<8x256xf32>
    %cst_23 = arith.constant 1.000000e+00 : f32
    %68 = vector.broadcast %cst_23 : f32 to vector<8x256xf32>
    %69 = arith.addf %68, %67 : vector<8x256xf32>
    %70 = arith.divf %68, %69 : vector<8x256xf32>
    %71 = vector.extract_strided_slice %0 {offsets = [0, 0], sizes = [8, 256], strides = [1, 1]} : vector<16x256xf32> to vector<8x256xf32>
    %72 = arith.mulf %70, %71 : vector<8x256xf32>
    %73 = arith.addf %72, %71 : vector<8x256xf32>
    %c0_24 = arith.constant 0 : index
    %c0_25 = arith.constant 0 : index
    %74 = vector.load %arg6[%c0_24, %c0_25] : memref<16x256xf32, #tpu.memory_space<vmem>>, vector<8x256xf32>
    tpu.vector_store %arg6[%c0_24, %c0_25], %73 {strides = array<i32>} : memref<16x256xf32, #tpu.memory_space<vmem>>, vector<8x256xf32>,
    %75 = vector.extract_strided_slice %52 {offsets = [8, 0], sizes = [8, 256], strides = [1, 1]} : vector<16x256xf32> to vector<8x256xf32>
    %cst_26 = arith.constant dense<0.000000e+00> : vector<8x256xf32>
    %76 = tpu.matmul %60, %75, %cst_26 {dimension_numbers = #tpu.dot_dimension_numbers<[1], [0], [0], [1], [0, 0, 1, 1], [], []>} : vector<8x8xf32>, vector<8x256xf32>, vector<8x256xf32> -> vector<8x256xf32>
    %77 = vector.broadcast %61 : vector<8x1xf32> to vector<8x256xf32>
    %78 = arith.addf %76, %77 : vector<8x256xf32>
    %79 = arith.negf %78 : vector<8x256xf32>
    %80 = math.exp %79 : vector<8x256xf32>
    %cst_27 = arith.constant 1.000000e+00 : f32
    %81 = vector.broadcast %cst_27 : f32 to vector<8x256xf32>
    %82 = arith.addf %81, %80 : vector<8x256xf32>
    %83 = arith.divf %81, %82 : vector<8x256xf32>
    %84 = vector.extract_strided_slice %0 {offsets = [8, 0], sizes = [8, 256], strides = [1, 1]} : vector<16x256xf32> to vector<8x256xf32>
    %85 = arith.mulf %83, %84 : vector<8x256xf32>
    %86 = arith.addf %85, %84 : vector<8x256xf32>
    %c8 = arith.constant 8 : index
    %c0_28 = arith.constant 0 : index
    %87 = vector.load %arg6[%c8, %c0_28] : memref<16x256xf32, #tpu.memory_space<vmem>>, vector<8x256xf32>
    tpu.vector_store %arg6[%c8, %c0_28], %86 {strides = array<i32>} : memref<16x256xf32, #tpu.memory_space<vmem>>, vector<8x256xf32>,
    return
  }
  func.func @transform_0(%arg0: i32) -> (i32, i32) {
    %c0_i32 = arith.constant 0 : i32
    %c0_i32_0 = arith.constant 0 : i32
    return %arg0, %c0_i32 : i32, i32
  }
  func.func @transform_1(%arg0: i32) -> (i32, i32) {
    %c0_i32 = arith.constant 0 : i32
    %c0_i32_0 = arith.constant 0 : i32
    %c0_i32_1 = arith.constant 0 : i32
    return %c0_i32, %c0_i32_0 : i32, i32
  }
  func.func @transform_2(%arg0: i32) -> (i32, i32) {
    %c0_i32 = arith.constant 0 : i32
    %c0_i32_0 = arith.constant 0 : i32
    %c0_i32_1 = arith.constant 0 : i32
    return %c0_i32, %c0_i32_0 : i32, i32
  }
  func.func @transform_3(%arg0: i32) -> (i32, i32) {
    %c0_i32 = arith.constant 0 : i32
    %c0_i32_0 = arith.constant 0 : i32
    %c0_i32_1 = arith.constant 0 : i32
    return %c0_i32, %c0_i32_0 : i32, i32
  }
  func.func @transform_4(%arg0: i32) -> (i32, i32) {
    %c0_i32 = arith.constant 0 : i32
    %c0_i32_0 = arith.constant 0 : i32
    return %arg0, %c0_i32 : i32, i32
  }
  func.func @transform_5(%arg0: i32) -> (i32, i32) {
    %c0_i32 = arith.constant 0 : i32
    %c0_i32_0 = arith.constant 0 : i32
    return %arg0, %c0_i32 : i32, i32
  }
}

</mosaic_0001>

<llo_original>
// kernel: tpu_custom_call.1
$region0: #{tpu_custom_call.1}
  #allocation0 [shape = 'u32[]', space=smem, size = 0x4, offset = 0x4, fixed_abs, tag = 'smem constant byte address 0x4 - core index']
  #allocation1 [shape = 'u32[144,128]{1,0:T(1,128)}', space=vmem, size = 0x12000, scoped, tag = 'internal scratch']
  %s0 = inlined_call_operand.hbm [shape: f32[16,256], index: 0, kind: input, shape index: {}]
  %s1 = inlined_call_operand.vmem [shape: f32[8,8], index: 1, kind: input, shape index: {}]
  %s2 = inlined_call_operand.vmem [shape: f32[8,1], index: 2, kind: input, shape index: {}]
  %s3 = inlined_call_operand.vmem [shape: f32[16,1], index: 3, kind: input, shape index: {}]
  %s4 = inlined_call_operand.hbm [shape: f32[16,256], index: 4, kind: output, shape index: {0}]
  %s5 = inlined_call_operand.hbm [shape: f32[16,256], index: 5, kind: output, shape index: {1}]
  %6 = xla_tuple %s4, %s5
  %s7 = sld [smem:[#allocation0]]
  $region38: #{tpu_custom_call.1} parent=0
    _
  %s9 = ssub.s32 1, %s7
  %s10 = scalar_select 0, %s9, %s7
  $region1: #{tpu_custom_call.1} parent=0
    #allocation2 [shape = 'u8[16384]{0}', space=vmem, size = 0x4000, scoped, tag = 'input window, operand 0, single buffered']
    #allocation3 [shape = 's32[1]{0}', space=sflag, size = 0x4, scoped, tag = 'scoped memory for tpu_custom_call.1']
    #allocation4 [shape = 's32[1]{0}', space=sflag, size = 0x4, scoped, tag = 'scoped memory for tpu_custom_call.1']
    #allocation5 [shape = 'u8[16384]{0}', space=vmem, size = 0x4000, scoped, tag = 'output window, operand 0, single buffered']
    #allocation6 [shape = 'u8[16384]{0}', space=vmem, size = 0x4000, scoped, tag = 'output window, operand 1, single buffered']
    #allocation7 [shape = 's32[1]{0}', space=sflag, size = 0x4, scoped, tag = 'scoped memory for tpu_custom_call.1']
    %11 = vsyncpa [#allocation3], 0
    %12 = vsyncpa [#allocation4], 0
    %13 = vsyncpa [#allocation7], 0
    // Predicated region
    $region2: #{tpu_custom_call.1} parent=1 // pred_check
      _
    $region3: #{tpu_custom_call.1} parent=1 // pred_check_branch
      %15 = sbr.rel (0) target = $region5
    $region4: #{tpu_custom_call.1} parent=1 // pred_region
      %s17 = ssub.s32 512, 512
      %18 = vsyncadd [#allocation3], %s17
      %s19 = sshll.u32 [#allocation2], 4
      %s20 = int_to_ptr.vmem [resolvable:$true] %s19
      %25 = dma.hbm_to_vmem [thread:$0]  %s0, 512, %s20, [#allocation3], 256, 256, 16
    $region5: #{tpu_custom_call.1} parent=1 // pred_fallthru
      _
    // Predicated region
    $region6: #{tpu_custom_call.1} parent=1 // pred_check
      _
    $region7: #{tpu_custom_call.1} parent=1 // pred_check_branch
      %27 = sbr.rel (0) target = $region9
    $region8: #{tpu_custom_call.1} parent=1 // pred_region
      _
    $region9: #{tpu_custom_call.1} parent=1 // pred_fallthru
      _
    // Predicated region
    $region10: #{tpu_custom_call.1} parent=1 // pred_check
      _
    $region11: #{tpu_custom_call.1} parent=1 // pred_check_branch
      %29 = sbr.rel (0) target = $region13
    $region12: #{tpu_custom_call.1} parent=1 // pred_region
      _
    $region13: #{tpu_custom_call.1} parent=1 // pred_fallthru
      _
    // Predicated region
    $region14: #{tpu_custom_call.1} parent=1 // pred_check
      _
    $region15: #{tpu_custom_call.1} parent=1 // pred_check_branch
      %31 = sbr.rel (0) target = $region17
    $region16: #{tpu_custom_call.1} parent=1 // pred_region
      _
    $region17: #{tpu_custom_call.1} parent=1 // pred_fallthru
      _
    // Predicated region
    $region18: #{tpu_custom_call.1} parent=1 // pred_check
      _
    $region19: #{tpu_custom_call.1} parent=1 // pred_check_branch
      %33 = sbr.rel (0) target = $region21
    $region20: #{tpu_custom_call.1} parent=1 // pred_region
      %34 = dma.done [#allocation3], 512
    $region21: #{tpu_custom_call.1} parent=1 // pred_fallthru
      _
    %v35 = vld [vmem:[#allocation2] sm:$0xff]
    %v36 = vld [vmem:[#allocation2 + $0x8] sm:$0xff]
    %v37 = vld [vmem:[#allocation2 + $0x10] sm:$0xff]
    %v38 = vld [vmem:[#allocation2 + $0x18] sm:$0xff]
    %v39 = vlaneseq
    %v40 = vand.u32 %v39, 127
    %v41 = vadd.s32 %v40, 128
    %vm42 = vcmp.lt.s32.totalorder %v40, 0
    %v43 = vsub.s32 0, %v40
    %v44 = vsel %vm42, %v43, %v40
    %v45 = vshrl.u32 %v44, 4
    %v46 = vand.u32 %v44, 15
    %v47 = vsub.s32 0, %v46
    %v48 = vsel %vm42, %v47, %v46
    %vm49 = vcmp.lt.s32.totalorder %v41, 0
    %v50 = vsub.s32 0, %v41
    %v51 = vsel %vm49, %v50, %v41
    %v52 = vshrl.u32 %v51, 4
    %v53 = vand.u32 %v51, 15
    %v54 = vsub.s32 0, %v53
    %v55 = vsel %vm49, %v54, %v53
    %vm56 = vcmp.ne.s32.totalorder %v48, 0
    %vm57 = vcmp.ne.s32.totalorder %v55, 0
    %vm58 = vcmp.lt.s32.totalorder %v48, 0
    %vm59 = vcmp.lt.s32.totalorder %v55, 0
    %vm60 = vmand %vm58, %vm56
    %vm61 = vmand %vm59, %vm57
    %v62 = vadd.s32 %v48, 16
    %v63 = vadd.s32 %v55, 16
    %v64 = vsel %vm60, %v62, %v48
    %v65 = vsel %vm61, %v63, %v55
    %vm66 = vcmp.ne.s32.totalorder %v64, 0
    %vm67 = vcmp.ne.s32.totalorder %v65, 0
    %68 = vrot.lane.b32.xlu0 %v35, 1
    %v69 = vpop.permute.xlu0 %68
    %70 = vrot.lane.b32.xlu0 %v37, 1
    %v71 = vpop.permute.xlu0 %70
    %72 = vrot.lane.b32.xlu0 %v36, 1
    %v73 = vpop.permute.xlu0 %72
    %74 = vrot.lane.b32.xlu0 %v38, 1
    %v75 = vpop.permute.xlu0 %74
    %vm76 = vcmp.lt.s32.totalorder %v40, 1
    %v77 = vsel %vm76, %v69, %v73
    %v78 = vsel %vm76, %v71, %v75
    %v79 = vsel %vm76, %v73, %v69
    %v80 = vsel %vm76, %v75, %v71
    %v81 = vsel %vm66, 1, 0
    %v82 = vsel %vm67, 1, 0
    %vm83 = vcmp.eq.s32.totalorder %v81, 1
    %vm84 = vcmp.eq.s32.totalorder %v82, 1
    %v85 = vsel %vm83, %v79, 0.0
    %v86 = vsel %vm84, %v77, 0.0
    %v87 = vsel %vm83, %v80, 0.0
    %v88 = vsel %vm84, %v78, 0.0
    %vm89 = vcmp.ne.s32.totalorder %v64, 15
    %vm90 = vcmp.ne.s32.totalorder %v65, 15
    %91 = vrot.lane.b32.xlu0 %v35, 127
    %v92 = vpop.permute.xlu0 %91
    %93 = vrot.lane.b32.xlu0 %v37, 127
    %v94 = vpop.permute.xlu0 %93
    %95 = vrot.lane.b32.xlu0 %v36, 127
    %v96 = vpop.permute.xlu0 %95
    %97 = vrot.lane.b32.xlu0 %v38, 127
    %v98 = vpop.permute.xlu0 %97
    %vm99 = vcmp.lt.s32.totalorder %v40, 127
    %v100 = vsel %vm99, %v92, %v96
    %v101 = vsel %vm99, %v94, %v98
    %v102 = vsel %vm99, %v96, %v92
    %v103 = vsel %vm99, %v98, %v94
    %v104 = vsel %vm89, 1, 0
    %v105 = vsel %vm90, 1, 0
    %vm106 = vcmp.eq.s32.totalorder %v104, 1
    %vm107 = vcmp.eq.s32.totalorder %v105, 1
    %v108 = vsel %vm106, %v100, 0.0
    %v109 = vsel %vm107, %v102, 0.0
    %v110 = vsel %vm106, %v101, 0.0
    %v111 = vsel %vm107, %v103, 0.0
    %v112 = vadd.f32 %v35, %v85
    %v113 = vadd.f32 %v36, %v86
    %v114 = vadd.f32 %v37, %v87
    %v115 = vadd.f32 %v38, %v88
    %v116 = vadd.f32 %v112, %v108
    %v117 = vadd.f32 %v113, %v109
    %v118 = vadd.f32 %v114, %v110
    %v119 = vadd.f32 %v115, %v111
    %vm120 = vcmp.ge.s32.totalorder %v40, 16
    %vm121 = vcmp.ge.s32.totalorder %v41, 16
    %122 = vrot.lane.b32.xlu0 %v116, 16
    %v123 = vpop.permute.xlu0 %122
    %124 = vrot.lane.b32.xlu0 %v118, 16
    %v125 = vpop.permute.xlu0 %124
    %126 = vrot.lane.b32.xlu0 %v117, 16
    %v127 = vpop.permute.xlu0 %126
    %128 = vrot.lane.b32.xlu0 %v119, 16
    %v129 = vpop.permute.xlu0 %128
    %vm130 = vcmp.lt.s32.totalorder %v40, 16
    %v131 = vsel %vm130, %v123, %v127
    %v132 = vsel %vm130, %v125, %v129
    %v133 = vsel %vm130, %v127, %v123
    %v134 = vsel %vm130, %v129, %v125
    %v135 = vsel %vm120, 1, 0
    %v136 = vsel %vm121, 1, 0
    %vm137 = vcmp.eq.s32.totalorder %v135, 1
    %vm138 = vcmp.eq.s32.totalorder %v136, 1
    %v139 = vsel %vm137, %v133, 0.0
    %v140 = vsel %vm138, %v131, 0.0
    %v141 = vsel %vm137, %v134, 0.0
    %v142 = vsel %vm138, %v132, 0.0
    %vm143 = vcmp.lt.s32.totalorder %v40, 240
    %vm144 = vcmp.lt.s32.totalorder %v41, 240
    %145 = vrot.lane.b32.xlu0 %v116, 112
    %v146 = vpop.permute.xlu0 %145
    %147 = vrot.lane.b32.xlu0 %v118, 112
    %v148 = vpop.permute.xlu0 %147
    %149 = vrot.lane.b32.xlu0 %v117, 112
    %v150 = vpop.permute.xlu0 %149
    %151 = vrot.lane.b32.xlu0 %v119, 112
    %v152 = vpop.permute.xlu0 %151
    %vm153 = vcmp.lt.s32.totalorder %v40, 112
    %v154 = vsel %vm153, %v146, %v150
    %v155 = vsel %vm153, %v148, %v152
    %v156 = vsel %vm153, %v150, %v146
    %v157 = vsel %vm153, %v152, %v148
    %v158 = vsel %vm143, 1, 0
    %v159 = vsel %vm144, 1, 0
    %vm160 = vcmp.eq.s32.totalorder %v158, 1
    %vm161 = vcmp.eq.s32.totalorder %v159, 1
    %v162 = vsel %vm160, %v154, 0.0
    %v163 = vsel %vm161, %v156, 0.0
    %v164 = vsel %vm160, %v155, 0.0
    %v165 = vsel %vm161, %v157, 0.0
    %v166 = vadd.f32 %v116, %v139
    %v167 = vadd.f32 %v117, %v140
    %v168 = vadd.f32 %v118, %v141
    %v169 = vadd.f32 %v119, %v142
    %v170 = vadd.f32 %v166, %v162
    %v171 = vadd.f32 %v167, %v163
    %v172 = vadd.f32 %v168, %v164
    %v173 = vadd.f32 %v169, %v165
    %v174 = vmul.f32 %v170, 0.11111111
    %v175 = vmul.f32 %v171, 0.11111111
    %v176 = vmul.f32 %v172, 0.11111111
    %v177 = vmul.f32 %v173, 0.11111111
    %v178 = vsub.f32 %v35, %v174
    %v179 = vsub.f32 %v36, %v175
    %v180 = vsub.f32 %v37, %v176
    %v181 = vsub.f32 %v38, %v177
    %v182 = vld [vmem:[%s3] sm:$0xff]
    %v183 = vld [vmem:[%s3 + $0x8] sm:$0xff]
    %vm184 = vcmp.ge.f32.partialorder %v178, 0.0
    %vm185 = vcmp.ge.f32.partialorder %v179, 0.0
    %vm186 = vcmp.ge.f32.partialorder %v180, 0.0
    %vm187 = vcmp.ge.f32.partialorder %v181, 0.0
    %189 = vset.pattern.permute.xlu0 0
    %190 = vperm.xlu0 %189, %v182
    %v191 = vpop.permute.xlu0 %190
    %194 = vset.pattern.permute.xlu0 0
    %195 = vperm.xlu0 %194, %v183
    %v196 = vpop.permute.xlu0 %195
    %v198 = vmul.f32 %v191, %v178
    %v199 = vmul.f32 %v191, %v179
    %v200 = vmul.f32 %v196, %v180
    %v201 = vmul.f32 %v196, %v181
    %v202 = vsel %vm184, %v178, %v198
    %v203 = vsel %vm185, %v179, %v199
    %v204 = vsel %vm186, %v180, %v200
    %v205 = vsel %vm187, %v181, %v201
    %206 = vst [vmem:[#allocation5] sm:$0xff] %v202
    %207 = vst [vmem:[#allocation5 + $0x8] sm:$0xff] %v203
    %208 = vst [vmem:[#allocation5 + $0x10] sm:$0xff] %v204
    %209 = vst [vmem:[#allocation5 + $0x18] sm:$0xff] %v205
    %v210 = vld [vmem:[%s1] sm:$0xff]
    %v211 = vld [vmem:[%s2] sm:$0xff]
    %213 = vset.pattern.permute.xlu0 0
    %214 = vperm.xlu0 %213, %v211
    %v215 = vpop.permute.xlu0 %214
    %vm217 = vcmask 64512
    %v219 = vsel %vm217, %v210, 0
    %221 = vmatprep.subr.mxu0 %v179
    %222 = vmatpush1.msra.mxu0 %v178
    %223 = vmatprep.subr.mxu0 0.0
    %224 = vmatpush1.msra.mxu0 0.0
    %225 = vmatprep.subr.mxu0 0.0
    %226 = vmatpush1.msra.mxu0 0.0
    %227 = vmatprep.subr.mxu0 0.0
    %228 = vmatpush1.msra.mxu0 0.0
    %229 = vmatprep.subr.mxu0 0.0
    %230 = vmatpush1.msra.mxu0 0.0
    %231 = vmatprep.subr.mxu0 0.0
    %232 = vmatpush1.msra.mxu0 0.0
    %233 = vmatprep.subr.mxu0 0.0
    %234 = vmatpush1.msra.mxu0 0.0
    %235 = vmatprep.subr.mxu0 0.0
    %236 = vmatpush1.msra.mxu0 0.0
    %237 = vmatprep.subr.mxu0 0.0
    %238 = vmatpush1.msra.mxu0 0.0
    %239 = vmatprep.subr.mxu0 0.0
    %240 = vmatpush1.msra.mxu0 0.0
    %241 = vmatprep.subr.mxu0 0.0
    %242 = vmatpush1.msra.mxu0 0.0
    %243 = vmatprep.subr.mxu0 0.0
    %244 = vmatpush1.msra.mxu0 0.0
    %245 = vmatprep.subr.mxu0 0.0
    %246 = vmatpush1.msra.mxu0 0.0
    %247 = vmatprep.subr.mxu0 0.0
    %248 = vmatpush1.msra.mxu0 0.0
    %249 = vmatprep.subr.mxu0 0.0
    %250 = vmatpush1.msra.mxu0 0.0
    %251 = vmatprep.subr.mxu0 0.0
    %252 = vmatpush1.msra.mxu0 0.0
    %253 = vmatprep.subr.mxu0 0.0
    %254 = vmatpush1.msra.mxu0 0.0
    %255 = vmatprep.subr.mxu0 0.0
    %256 = vmatpush1.msra.mxu0 0.0
    %257 = vmatprep.subr.mxu0 0.0
    %258 = vmatpush1.msra.mxu0 0.0
    %259 = vmatprep.subr.mxu0 0.0
    %260 = vmatpush1.msra.mxu0 0.0
    %261 = vmatprep.subr.mxu0 0.0
    %262 = vmatpush1.msra.mxu0 0.0
    %263 = vmatprep.subr.mxu0 0.0
    %264 = vmatpush1.msra.mxu0 0.0
    %265 = vmatprep.subr.mxu0 0.0
    %266 = vmatpush1.msra.mxu0 0.0
    %267 = vmatprep.subr.mxu0 0.0
    %268 = vmatpush1.msra.mxu0 0.0
    %269 = vmatprep.subr.mxu0 0.0
    %270 = vmatpush1.msra.mxu0 0.0
    %271 = vmatprep.subr.mxu0 0.0
    %272 = vmatpush1.msra.mxu0 0.0
    %273 = vmatprep.subr.mxu0 0.0
    %274 = vmatpush1.msra.mxu0 0.0
    %275 = vmatprep.subr.mxu0 0.0
    %276 = vmatpush1.msra.mxu0 0.0
    %277 = vmatprep.subr.mxu0 0.0
    %278 = vmatpush1.msra.mxu0 0.0
    %279 = vmatprep.subr.mxu0 0.0
    %280 = vmatpush1.msra.mxu0 0.0
    %281 = vmatprep.subr.mxu0 0.0
    %282 = vmatpush1.msra.mxu0 0.0
    %283 = vmatprep.subr.mxu0 0.0
    %284 = vmatpush1.msra.mxu0 0.0
    %285 = vmatprep.mubr.f32.mxu0 0.0
    %286 = vmatmul.mubr.f32.gmra.mrb[0].mxu0 %v219
    %v287 = vpop.f32.mrb[0].mxu0
    %v288 = vadd.f32 %v215, %v287
    %v289 = vpop.f32.mrb[0].mxu0
    %v290 = vadd.f32 %v215, %v289
    %291 = vdwg.mxu0
    %v292 = vxor.u32 %v288, 2147483648
    %v293 = vxor.u32 %v290, 2147483648
    %v294 = vmul.f32 %v292, 1.442695
    %v295 = vpow.pop %v294
    %v296 = vmul.f32 %v293, 1.442695
    %v297 = vpow.pop %v296
    %v298 = vadd.f32 %v295, 1.0
    %v299 = vadd.f32 %v297, 1.0
    %v300 = vrcp.pop %v298
    %v301 = vmul.f32 1.0, %v300
    %v302 = vrcp.pop %v299
    %v303 = vmul.f32 1.0, %v302
    %v304 = vmul.f32 %v301, %v35
    %v305 = vmul.f32 %v303, %v36
    %v306 = vadd.f32 %v304, %v35
    %v307 = vadd.f32 %v305, %v36
    %308 = vst [vmem:[#allocation6] sm:$0xff] %v306
    %309 = vst [vmem:[#allocation6 + $0x8] sm:$0xff] %v307
    %310 = vmatprep.subr.mxu0 %v181
    %311 = vmatpush1.msra.mxu0 %v180
    %312 = vmatprep.subr.mxu0 0.0
    %313 = vmatpush1.msra.mxu0 0.0
    %314 = vmatprep.subr.mxu0 0.0
    %315 = vmatpush1.msra.mxu0 0.0
    %316 = vmatprep.subr.mxu0 0.0
    %317 = vmatpush1.msra.mxu0 0.0
    %318 = vmatprep.subr.mxu0 0.0
    %319 = vmatpush1.msra.mxu0 0.0
    %320 = vmatprep.subr.mxu0 0.0
    %321 = vmatpush1.msra.mxu0 0.0
    %322 = vmatprep.subr.mxu0 0.0
    %323 = vmatpush1.msra.mxu0 0.0
    %324 = vmatprep.subr.mxu0 0.0
    %325 = vmatpush1.msra.mxu0 0.0
    %326 = vmatprep.subr.mxu0 0.0
    %327 = vmatpush1.msra.mxu0 0.0
    %328 = vmatprep.subr.mxu0 0.0
    %329 = vmatpush1.msra.mxu0 0.0
    %330 = vmatprep.subr.mxu0 0.0
    %331 = vmatpush1.msra.mxu0 0.0
    %332 = vmatprep.subr.mxu0 0.0
    %333 = vmatpush1.msra.mxu0 0.0
    %334 = vmatprep.subr.mxu0 0.0
    %335 = vmatpush1.msra.mxu0 0.0
    %336 = vmatprep.subr.mxu0 0.0
    %337 = vmatpush1.msra.mxu0 0.0
    %338 = vmatprep.subr.mxu0 0.0
    %339 = vmatpush1.msra.mxu0 0.0
    %340 = vmatprep.subr.mxu0 0.0
    %341 = vmatpush1.msra.mxu0 0.0
    %342 = vmatprep.subr.mxu0 0.0
    %343 = vmatpush1.msra.mxu0 0.0
    %344 = vmatprep.subr.mxu0 0.0
    %345 = vmatpush1.msra.mxu0 0.0
    %346 = vmatprep.subr.mxu0 0.0
    %347 = vmatpush1.msra.mxu0 0.0
    %348 = vmatprep.subr.mxu0 0.0
    %349 = vmatpush1.msra.mxu0 0.0
    %350 = vmatprep.subr.mxu0 0.0
    %351 = vmatpush1.msra.mxu0 0.0
    %352 = vmatprep.subr.mxu0 0.0
    %353 = vmatpush1.msra.mxu0 0.0
    %354 = vmatprep.subr.mxu0 0.0
    %355 = vmatpush1.msra.mxu0 0.0
    %356 = vmatprep.subr.mxu0 0.0
    %357 = vmatpush1.msra.mxu0 0.0
    %358 = vmatprep.subr.mxu0 0.0
    %359 = vmatpush1.msra.mxu0 0.0
    %360 = vmatprep.subr.mxu0 0.0
    %361 = vmatpush1.msra.mxu0 0.0
    %362 = vmatprep.subr.mxu0 0.0
    %363 = vmatpush1.msra.mxu0 0.0
    %364 = vmatprep.subr.mxu0 0.0
    %365 = vmatpush1.msra.mxu0 0.0
    %366 = vmatprep.subr.mxu0 0.0
    %367 = vmatpush1.msra.mxu0 0.0
    %368 = vmatprep.subr.mxu0 0.0
    %369 = vmatpush1.msra.mxu0 0.0
    %370 = vmatprep.subr.mxu0 0.0
    %371 = vmatpush1.msra.mxu0 0.0
    %372 = vmatprep.subr.mxu0 0.0
    %373 = vmatpush1.msra.mxu0 0.0
    %374 = vmatprep.mubr.f32.mxu0 0.0
    %375 = vmatmul.mubr.f32.gmra.mrb[0].mxu0 %v219
    %v376 = vpop.f32.mrb[0].mxu0
    %v377 = vadd.f32 %v215, %v376
    %v378 = vpop.f32.mrb[0].mxu0
    %v379 = vadd.f32 %v215, %v378
    %380 = vdwg.mxu0
    %v381 = vxor.u32 %v377, 2147483648
    %v382 = vxor.u32 %v379, 2147483648
    %v383 = vmul.f32 %v381, 1.442695
    %v384 = vpow.pop %v383
    %v385 = vmul.f32 %v382, 1.442695
    %v386 = vpow.pop %v385
    %v387 = vadd.f32 %v384, 1.0
    %v388 = vadd.f32 %v386, 1.0
    %v389 = vrcp.pop %v387
    %v390 = vmul.f32 1.0, %v389
    %v391 = vrcp.pop %v388
    %v392 = vmul.f32 1.0, %v391
    %v393 = vmul.f32 %v390, %v37
    %v394 = vmul.f32 %v392, %v38
    %v395 = vadd.f32 %v393, %v37
    %v396 = vadd.f32 %v394, %v38
    %397 = vst [vmem:[#allocation6 + $0x10] sm:$0xff] %v395
    %398 = vst [vmem:[#allocation6 + $0x18] sm:$0xff] %v396
    // Predicated region
    $region22: #{tpu_custom_call.1} parent=1 // pred_check
      _
    $region23: #{tpu_custom_call.1} parent=1 // pred_check_branch
      %400 = sbr.rel (0) target = $region25
    $region24: #{tpu_custom_call.1} parent=1 // pred_region
      %s402 = ssub.s32 512, 512
      %403 = vsyncadd [#allocation4], %s402
      %s404 = sshll.u32 [#allocation5], 4
      %s405 = int_to_ptr.vmem [resolvable:$true] %s404
      %410 = dma.vmem_to_hbm [thread:$0]  %s405, 512, %s4, [#allocation4], 256, 256, 16
    $region25: #{tpu_custom_call.1} parent=1 // pred_fallthru
      _
    // Predicated region
    $region26: #{tpu_custom_call.1} parent=1 // pred_check
      _
    $region27: #{tpu_custom_call.1} parent=1 // pred_check_branch
      %412 = sbr.rel (0) target = $region29
    $region28: #{tpu_custom_call.1} parent=1 // pred_region
      %s414 = ssub.s32 512, 512
      %415 = vsyncadd [#allocation7], %s414
      %s416 = sshll.u32 [#allocation6], 4
      %s417 = int_to_ptr.vmem [resolvable:$true] %s416
      %422 = dma.vmem_to_hbm [thread:$0]  %s417, 512, %s5, [#allocation7], 256, 256, 16
    $region29: #{tpu_custom_call.1} parent=1 // pred_fallthru
      _
    // Predicated region
    $region30: #{tpu_custom_call.1} parent=1 // pred_check
      _
    $region31: #{tpu_custom_call.1} parent=1 // pred_check_branch
      %424 = sbr.rel (0) target = $region33
    $region32: #{tpu_custom_call.1} parent=1 // pred_region
      %425 = dma.done [#allocation4], 512
    $region33: #{tpu_custom_call.1} parent=1 // pred_fallthru
      _
    // Predicated region
    $region34: #{tpu_custom_call.1} parent=1 // pred_check
      _
    $region35: #{tpu_custom_call.1} parent=1 // pred_check_branch
      %427 = sbr.rel (0) target = $region37
    $region36: #{tpu_custom_call.1} parent=1 // pred_region
      %428 = dma.done [#allocation7], 512
    $region37: #{tpu_custom_call.1} parent=1 // pred_fallthru
      _
    %429 = vsyncpa [#allocation3], 1
    %430 = vsyncpa [#allocation4], 1
    %431 = vsyncpa [#allocation7], 1

</llo_original>
